<compile_context>
chip_gen: v5e
topology: v5e:2x2
jax: 0.10.0
libtpu: 0.0.40
codegen_flags: <defaults>
</compile_context>

<pallas_src>
import jax
import jax.numpy as jnp
from jax.experimental import pallas as pl
from jax.experimental.pallas import tpu as pltpu


def _value_proj_kernel(x_ref, w1_ref, b1_ref, w2_ref, b2_ref, w3r_ref, c0_ref,
                       o_ref):
    # In-VMEM cast to the MXU dtype (no extra HBM pass in the wrapper).
    x = x_ref[...].astype(w1_ref.dtype)
    # Layer 1: Linear + SiLU. MXU accumulates in f32; SiLU runs in f32 so the
    # same kernel is safe on v5e (no bf16 VPU/EUP).
    h = jnp.dot(x, w1_ref[...], preferred_element_type=jnp.float32) + b1_ref[...]
    h = h * jax.nn.sigmoid(h)                       # SiLU (f32)
    # Layer 2: Linear + SiLU (cast LHS to the weight dtype for the MXU).
    h = jnp.dot(h.astype(w2_ref.dtype), w2_ref[...],
                preferred_element_type=jnp.float32) + b2_ref[...]
    h = h * jax.nn.sigmoid(h)                       # SiLU (f32)
    # Head Linear(D2, 1) fused with the (y - 5) * 100 affine:
    #   w3r_ref = 100 * W3^T  (1, D2),  c0 = 100 * (b3 - 5)  (SMEM scalar)
    #   out = sum(h * w3_row, -1) + c0  ==  (h @ W3 + b3 - 5) * 100
    # keepdims lane-reduce -> (tb, 1) column stored directly (no relayout).
    y = jnp.sum(h * w3r_ref[...], axis=-1, keepdims=True) + c0_ref[0]
    o_ref[...] = y.astype(o_ref.dtype)


def _round_up(n, m):
    return ((n + m - 1) // m) * m


def _tensorcores_per_chip():
    """Best-effort TensorCore count per device (v5e/v6e: 1, v7x/v4/v5p: 2)."""
    try:
        info = pltpu.get_tpu_info()
        for name in ("num_cores", "tensorcore_count", "num_tensorcores"):
            n = getattr(info, name, None)
            if isinstance(n, int) and n > 0:
                return n
    except Exception:
        pass
    try:
        d = jax.devices()[0]
        n = getattr(d, "num_cores", None)
        if isinstance(n, int) and n > 0:
            return n
        kind = str(getattr(d, "device_kind", "")).lower()
        if any(tag in kind for tag in ("v7", "v4", "v5p", "v5 p")):
            return 2
    except Exception:
        pass
    return 1


def _vmem_capacity_bytes():
    try:
        return int(pltpu.get_tpu_info().vmem_capacity_bytes)
    except Exception:
        return 64 * 1024 * 1024          # conservative (v7x physical)


def _choose_batch_tile(B, H, x_itemsize, num_cores, per_buffer_budget):
    """Rows per grid step.

    - Target several microseconds of work per step (~1 MiB of x traffic, i.e.
      2K-8K rows for small H) so the ~0.35us per-grid-step overhead vanishes.
    - Capped so the double-buffered x tile fits the per-generation budget.
    - Split across TensorCores only on multi-TC chips (v7x).
    - If the whole batch fits one tile, use block == full dim (legal even when
      B is not a multiple of 8).
    """
    sub = 8                                           # f32 sublane packing
    row_bytes = max(1, H * x_itemsize)
    cap = max(sub, (per_buffer_budget // row_bytes) // sub * sub)
    target = max(2048, (1024 * 1024) // row_bytes)    # ~1 MiB of x per step
    tb = min(cap, target)
    if num_cores > 1 and B > num_cores * sub:
        # Balanced work for both TensorCores under "parallel" semantics.
        tb = min(tb, max(sub, _round_up(pl.cdiv(B, num_cores), sub)))
    tb = max(sub, (tb // sub) * sub)
    if B <= tb:
        return int(B)                                 # single full-array tile
    return int(tb)


def ia2c_value_proj(x, params, *, batch_tile=None, mxu_dtype=None):
    """x: (B, H). Returns (B,) float32 = (SiluMLP(x)[..., 0] - 5) * 100.

    mxu_dtype: optional dtype (e.g. jnp.bfloat16) for the W1/W2 MXU streams;
    x is cast in VMEM inside the kernel (no extra HBM pass). Accumulation,
    SiLU, the head reduction and the 100x affine stay float32.  Note the bf16
    path quantizes a value that is then amplified 100x -> O(1) absolute error
    on the output scale.
    """
    w1, b1, w2, b2, w3, b3 = params
    B, H = x.shape
    D1 = w1.shape[1]
    D2 = w2.shape[1]

    mxu_dtype = jnp.float32 if mxu_dtype is None else jnp.dtype(mxu_dtype)
    mxu_itemsize = jnp.dtype(mxu_dtype).itemsize
    x_itemsize = jnp.dtype(x.dtype).itemsize

    num_cores = _tensorcores_per_chip()
    vmem_cap = _vmem_capacity_bytes()
    # Generation-aware per-buffer budget for the double-buffered x tile.
    per_buffer_budget = (16 * 1024 * 1024 if vmem_cap >= 96 * 1024 * 1024
                         else 8 * 1024 * 1024)

    tb = (_choose_batch_tile(B, H, x_itemsize, num_cores, per_buffer_budget)
          if batch_tile is None else int(batch_tile))
    num_tiles = pl.cdiv(B, tb)

    # Weights / biases: tiny, cast once in the wrapper, fetched once by the
    # pipeline (constant index_map).
    w1_in = w1.astype(mxu_dtype)
    w2_in = w2.astype(mxu_dtype)
    b1_in = b1.astype(jnp.float32).reshape(1, D1)
    b2_in = b2.astype(jnp.float32).reshape(1, D2)
    # Fold the output head and the (y - 5) * 100 affine (kept in f32).
    w3_row = (100.0 * w3.astype(jnp.float32)).reshape(1, D2)
    c0 = (100.0 * (b3.astype(jnp.float32) - 5.0)).reshape(1)

    # Scoped-VMEM limit derived from the real footprint (+ headroom for the
    # (8,128) padding of the small weight blocks), capped per generation.
    x_db = 2 * tb * H * x_itemsize
    out_db = 2 * tb * 4
    w_bytes = 2 * ((H * D1 + D1 * D2) * mxu_itemsize + (2 * D1 + 2 * D2) * 4)
    footprint = x_db + out_db + w_bytes + 4 * 1024 * 1024
    vmem_limit = int(min(int(0.75 * vmem_cap),
                         max(32 * 1024 * 1024, footprint)))

    out = pl.pallas_call(
        _value_proj_kernel,
        out_shape=jax.ShapeDtypeStruct((B, 1), jnp.float32),
        grid_spec=pltpu.PrefetchScalarGridSpec(
            num_scalar_prefetch=0,
            grid=(num_tiles,),
            in_specs=[
                pl.BlockSpec((tb, H), lambda i: (i, 0)),     # x tile (pipelined)
                pl.BlockSpec((H, D1), lambda i: (0, 0)),     # W1 (fetched once)
                pl.BlockSpec((1, D1), lambda i: (0, 0)),     # b1
                pl.BlockSpec((D1, D2), lambda i: (0, 0)),    # W2
                pl.BlockSpec((1, D2), lambda i: (0, 0)),     # b2
                pl.BlockSpec((1, D2), lambda i: (0, 0)),     # 100 * W3^T
                pl.BlockSpec(memory_space=pltpu.MemorySpace.SMEM),  # c0 scalar
            ],
            out_specs=pl.BlockSpec((tb, 1), lambda i: (i, 0)),
        ),
        compiler_params=pltpu.CompilerParams(
            dimension_semantics=("parallel",),
            vmem_limit_bytes=vmem_limit,
        ),
    )(x, w1_in, b1_in, w2_in, b2_in, w3_row, c0)

    return out.reshape(B)


def init_params(key, lstm_hidden_dim, mlp_hidden_dims):
    """Deterministic Linear init (uniform +/- 1/sqrt(fan_in)), matching
    nn.Linear's default scheme. Biases stored (1, D) for 2-D VMEM layout."""
    dims = [lstm_hidden_dim] + list(mlp_hidden_dims) + [1]
    params = []
    for i in range(len(dims) - 1):
        fan_in, fan_out = dims[i], dims[i + 1]
        key, kw, kb = jax.random.split(key, 3)
        bound = 1.0 / jnp.sqrt(float(fan_in))
        w = jax.random.uniform(kw, (fan_in, fan_out), jnp.float32,
                               -bound, bound)
        b = jax.random.uniform(kb, (1, fan_out), jnp.float32, -bound, bound)
        params += [w, b]
    return tuple(params)


def _reference(x, params):
    w1, b1, w2, b2, w3, b3 = params
    h = jax.nn.silu(x @ w1 + b1)
    h = jax.nn.silu(h @ w2 + b2)
    y = h @ w3 + b3
    return (y[..., 0] - 5.0) * 100.0


if __name__ == "__main__":
    key = jax.random.PRNGKey(0)
    lstm_hidden_dim = 32          # H
    mlp_hidden_dims = [64, 32]    # D1, D2

    kx1, kx2, kp = jax.random.split(key, 3)
    params = init_params(kp, lstm_hidden_dim, mlp_hidden_dims)

    # Small batch: single grid step, block == full (non multiple-of-8) dim.
    x_small = jax.random.normal(kx1, (8, lstm_hidden_dim), jnp.float32)
    out_small = jax.block_until_ready(ia2c_value_proj(x_small, params))
    ref_small = _reference(x_small, params)
    assert out_small.shape == (8,)
    assert jnp.allclose(out_small, ref_small, atol=1e-2, rtol=1e-4), (
        out_small, ref_small)

    # Ragged batch (50 rows): no wrapper pad, auto tile.
    x_big = jax.random.normal(kx2, (50, lstm_hidden_dim), jnp.float32)
    out_big = jax.block_until_ready(ia2c_value_proj(x_big, params))
    ref_big = _reference(x_big, params)
    assert out_big.shape == (50,)
    assert jnp.allclose(out_big, ref_big, atol=1e-2, rtol=1e-4), (
        out_big, ref_big)

    # Forced multi-step grid with a clipped boundary block (50 % 16 != 0):
    # exercises the no-pad over-read path.
    out_tiled = jax.block_until_ready(
        ia2c_value_proj(x_big, params, batch_tile=16))
    assert out_tiled.shape == (50,)
    assert jnp.allclose(out_tiled, ref_big, atol=1e-2, rtol=1e-4), (
        out_tiled, ref_big)

    # bf16 MXU fast path (v6e/v7x); x is cast in-kernel, accumulation / head /
    # affine stay f32.  100x amplification -> O(1) absolute tolerance.
    out_bf16 = jax.block_until_ready(
        ia2c_value_proj(x_big, params, mxu_dtype=jnp.bfloat16))
    assert out_bf16.shape == (50,)
    assert jnp.allclose(out_bf16, ref_big, atol=5.0, rtol=5e-2), (
        out_bf16, ref_big)

    print("KERNEL_OK")
</pallas_src>

<mosaic_0001>
module attributes {stable_mosaic.version = 11 : i64} {
  func.func @_value_proj_kernel(%arg0: i32, %arg1: memref<8x32xf32, #tpu.memory_space<vmem>>, %arg2: memref<32x64xf32, #tpu.memory_space<vmem>>, %arg3: memref<1x64xf32, #tpu.memory_space<vmem>>, %arg4: memref<64x32xf32, #tpu.memory_space<vmem>>, %arg5: memref<1x32xf32, #tpu.memory_space<vmem>>, %arg6: memref<1x32xf32, #tpu.memory_space<vmem>>, %arg7: memref<1xf32, #tpu.memory_space<smem>>, %arg8: memref<8x1xf32, #tpu.memory_space<vmem>>) attributes {dimension_semantics = [#tpu.dimension_semantics<parallel>], iteration_bounds = array<i64: 1>, scalar_prefetch = 0 : i64, scratch_operands = 0 : i64, tpu.core_type = #tpu.core_type<tc>, window_params = [{transform_indices = @transform_0, window_bounds = array<i64: 8, 32>}, {pipeline_mode = #tpu.pipeline_mode<synchronous>, transform_indices = @transform_1, window_bounds = array<i64: 32, 64>}, {pipeline_mode = #tpu.pipeline_mode<synchronous>, transform_indices = @transform_2, window_bounds = array<i64: 1, 64>}, {pipeline_mode = #tpu.pipeline_mode<synchronous>, transform_indices = @transform_3, window_bounds = array<i64: 64, 32>}, {pipeline_mode = #tpu.pipeline_mode<synchronous>, transform_indices = @transform_4, window_bounds = array<i64: 1, 32>}, {pipeline_mode = #tpu.pipeline_mode<synchronous>, transform_indices = @transform_5, window_bounds = array<i64: 1, 32>}, {transform_indices = @transform_6, window_bounds = array<i64: 1>}, {transform_indices = @transform_7, window_bounds = array<i64: 8, 1>}]} {
    %c0 = arith.constant 0 : index
    %c0_0 = arith.constant 0 : index
    %0 = vector.load %arg1[%c0, %c0_0] : memref<8x32xf32, #tpu.memory_space<vmem>>, vector<8x32xf32>
    %c0_1 = arith.constant 0 : index
    %c0_2 = arith.constant 0 : index
    %1 = vector.load %arg2[%c0_1, %c0_2] : memref<32x64xf32, #tpu.memory_space<vmem>>, vector<32x64xf32>
    %cst = arith.constant dense<0.000000e+00> : vector<8x64xf32>
    %2 = tpu.matmul %0, %1, %cst {dimension_numbers = #tpu.dot_dimension_numbers<[1], [0], [0], [1], [0, 0, 1, 1], [], []>} : vector<8x32xf32>, vector<32x64xf32>, vector<8x64xf32> -> vector<8x64xf32>
    %c0_3 = arith.constant 0 : index
    %c0_4 = arith.constant 0 : index
    %3 = vector.load %arg3[%c0_3, %c0_4] : memref<1x64xf32, #tpu.memory_space<vmem>>, vector<1x64xf32>
    %4 = vector.broadcast %3 : vector<1x64xf32> to vector<8x64xf32>
    %5 = arith.addf %2, %4 : vector<8x64xf32>
    %6 = arith.negf %5 : vector<8x64xf32>
    %7 = math.exp %6 : vector<8x64xf32>
    %cst_5 = arith.constant 1.000000e+00 : f32
    %8 = vector.broadcast %cst_5 : f32 to vector<8x64xf32>
    %9 = arith.addf %8, %7 : vector<8x64xf32>
    %10 = arith.divf %8, %9 : vector<8x64xf32>
    %11 = arith.mulf %5, %10 : vector<8x64xf32>
    %c0_6 = arith.constant 0 : index
    %c0_7 = arith.constant 0 : index
    %12 = vector.load %arg4[%c0_6, %c0_7] : memref<64x32xf32, #tpu.memory_space<vmem>>, vector<64x32xf32>
    %cst_8 = arith.constant dense<0.000000e+00> : vector<8x32xf32>
    %13 = tpu.matmul %11, %12, %cst_8 {dimension_numbers = #tpu.dot_dimension_numbers<[1], [0], [0], [1], [0, 0, 1, 1], [], []>} : vector<8x64xf32>, vector<64x32xf32>, vector<8x32xf32> -> vector<8x32xf32>
    %c0_9 = arith.constant 0 : index
    %c0_10 = arith.constant 0 : index
    %14 = vector.load %arg5[%c0_9, %c0_10] : memref<1x32xf32, #tpu.memory_space<vmem>>, vector<1x32xf32>
    %15 = vector.broadcast %14 : vector<1x32xf32> to vector<8x32xf32>
    %16 = arith.addf %13, %15 : vector<8x32xf32>
    %17 = arith.negf %16 : vector<8x32xf32>
    %18 = math.exp %17 : vector<8x32xf32>
    %cst_11 = arith.constant 1.000000e+00 : f32
    %19 = vector.broadcast %cst_11 : f32 to vector<8x32xf32>
    %20 = arith.addf %19, %18 : vector<8x32xf32>
    %21 = arith.divf %19, %20 : vector<8x32xf32>
    %22 = arith.mulf %16, %21 : vector<8x32xf32>
    %c0_12 = arith.constant 0 : index
    %c0_13 = arith.constant 0 : index
    %23 = vector.load %arg6[%c0_12, %c0_13] : memref<1x32xf32, #tpu.memory_space<vmem>>, vector<1x32xf32>
    %24 = vector.broadcast %23 : vector<1x32xf32> to vector<8x32xf32>
    %25 = arith.mulf %22, %24 : vector<8x32xf32>
    %cst_14 = arith.constant dense<0.000000e+00> : vector<8xf32>
    %26 = vector.multi_reduction <add>, %25, %cst_14 [1] : vector<8x32xf32> to vector<8xf32>
    %27 = vector.shape_cast %26 : vector<8xf32> to vector<8x1xf32>
    %c0_15 = arith.constant 0 : index
    %28 = memref.load %arg7[%c0_15] : memref<1xf32, #tpu.memory_space<smem>>
    %29 = vector.broadcast %28 : f32 to vector<8x1xf32>
    %30 = arith.addf %27, %29 : vector<8x1xf32>
    %c0_16 = arith.constant 0 : index
    %c0_17 = arith.constant 0 : index
    %31 = vector.load %arg8[%c0_16, %c0_17] : memref<8x1xf32, #tpu.memory_space<vmem>>, vector<8x1xf32>
    tpu.vector_store %arg8[%c0_16, %c0_17], %30 {strides = array<i32>} : memref<8x1xf32, #tpu.memory_space<vmem>>, vector<8x1xf32>,
    return
  }
  func.func @transform_0(%arg0: i32) -> (i32, i32) {
    %c0_i32 = arith.constant 0 : i32
    %c0_i32_0 = arith.constant 0 : i32
    return %arg0, %c0_i32 : i32, i32
  }
  func.func @transform_1(%arg0: i32) -> (i32, i32) {
    %c0_i32 = arith.constant 0 : i32
    %c0_i32_0 = arith.constant 0 : i32
    %c0_i32_1 = arith.constant 0 : i32
    return %c0_i32, %c0_i32_0 : i32, i32
  }
  func.func @transform_2(%arg0: i32) -> (i32, i32) {
    %c0_i32 = arith.constant 0 : i32
    %c0_i32_0 = arith.constant 0 : i32
    %c0_i32_1 = arith.constant 0 : i32
    return %c0_i32, %c0_i32_0 : i32, i32
  }
  func.func @transform_3(%arg0: i32) -> (i32, i32) {
    %c0_i32 = arith.constant 0 : i32
    %c0_i32_0 = arith.constant 0 : i32
    %c0_i32_1 = arith.constant 0 : i32
    return %c0_i32, %c0_i32_0 : i32, i32
  }
  func.func @transform_4(%arg0: i32) -> (i32, i32) {
    %c0_i32 = arith.constant 0 : i32
    %c0_i32_0 = arith.constant 0 : i32
    %c0_i32_1 = arith.constant 0 : i32
    return %c0_i32, %c0_i32_0 : i32, i32
  }
  func.func @transform_5(%arg0: i32) -> (i32, i32) {
    %c0_i32 = arith.constant 0 : i32
    %c0_i32_0 = arith.constant 0 : i32
    %c0_i32_1 = arith.constant 0 : i32
    return %c0_i32, %c0_i32_0 : i32, i32
  }
  func.func @transform_6(%arg0: i32) -> i32 {
    %c0_i32 = arith.constant 0 : i32
    %c0_i32_0 = arith.constant 0 : i32
    return %c0_i32 : i32
  }
  func.func @transform_7(%arg0: i32) -> (i32, i32) {
    %c0_i32 = arith.constant 0 : i32
    %c0_i32_0 = arith.constant 0 : i32
    return %arg0, %c0_i32 : i32, i32
  }
}

</mosaic_0001>

<llo_original>
// kernel: tpu_custom_call.1
$region0: #{tpu_custom_call.1}
  #allocation0 [shape = 'u32[]', space=smem, size = 0x4, offset = 0x4, fixed_abs, tag = 'smem constant byte address 0x4 - core index']
  #allocation1 [shape = 'u32[72,128]{1,0:T(1,128)}', space=vmem, size = 0x9000, scoped, tag = 'internal scratch']
  #allocation2 [shape = 'f32[1]{0:T(128)S(6)}', space=smem, size = 0x200, scoped, tag = 'scoped memory for tpu_custom_call.1']
  %s0 = inlined_call_operand.vmem [shape: f32[8,32], index: 0, kind: input, shape index: {}]
  %s1 = inlined_call_operand.vmem [shape: f32[32,64], index: 1, kind: input, shape index: {}]
  %s2 = inlined_call_operand.vmem [shape: f32[1,64], index: 2, kind: input, shape index: {}]
  %s3 = inlined_call_operand.vmem [shape: f32[64,32], index: 3, kind: input, shape index: {}]
  %s4 = inlined_call_operand.vmem [shape: f32[1,32], index: 4, kind: input, shape index: {}]
  %s5 = inlined_call_operand.vmem [shape: f32[1,32], index: 5, kind: input, shape index: {}]
  %s6 = inlined_call_operand.<no memory space> [shape: f32[1], index: 6, kind: input, shape index: {}]
  %s7 = inlined_call_operand.vmem [shape: f32[8,1], index: 7, kind: output, shape index: {}]
  %s8 = sld [smem:[#allocation0]]
  $region38: #{tpu_custom_call.1} parent=0
    _
  %s10 = ssub.s32 1, %s8
  %s11 = scalar_select 0, %s10, %s8
  %12 = sst [smem:[#allocation2]] %s6
  // Predicated region
  $region2: #{tpu_custom_call.1} parent=0 // pred_check
    _
  $region3: #{tpu_custom_call.1} parent=0 // pred_check_branch
    %14 = sbr.rel (0) target = $region5
  $region4: #{tpu_custom_call.1} parent=0 // pred_region
    _
  $region5: #{tpu_custom_call.1} parent=0 // pred_fallthru
    _
  // Predicated region
  $region6: #{tpu_custom_call.1} parent=0 // pred_check
    _
  $region7: #{tpu_custom_call.1} parent=0 // pred_check_branch
    %16 = sbr.rel (0) target = $region9
  $region8: #{tpu_custom_call.1} parent=0 // pred_region
    _
  $region9: #{tpu_custom_call.1} parent=0 // pred_fallthru
    _
  // Predicated region
  $region10: #{tpu_custom_call.1} parent=0 // pred_check
    _
  $region11: #{tpu_custom_call.1} parent=0 // pred_check_branch
    %18 = sbr.rel (0) target = $region13
  $region12: #{tpu_custom_call.1} parent=0 // pred_region
    _
  $region13: #{tpu_custom_call.1} parent=0 // pred_fallthru
    _
  // Predicated region
  $region14: #{tpu_custom_call.1} parent=0 // pred_check
    _
  $region15: #{tpu_custom_call.1} parent=0 // pred_check_branch
    %20 = sbr.rel (0) target = $region17
  $region16: #{tpu_custom_call.1} parent=0 // pred_region
    _
  $region17: #{tpu_custom_call.1} parent=0 // pred_fallthru
    _
  // Predicated region
  $region18: #{tpu_custom_call.1} parent=0 // pred_check
    _
  $region19: #{tpu_custom_call.1} parent=0 // pred_check_branch
    %22 = sbr.rel (0) target = $region21
  $region20: #{tpu_custom_call.1} parent=0 // pred_region
    _
  $region21: #{tpu_custom_call.1} parent=0 // pred_fallthru
    _
  // Predicated region
  $region22: #{tpu_custom_call.1} parent=0 // pred_check
    _
  $region23: #{tpu_custom_call.1} parent=0 // pred_check_branch
    %24 = sbr.rel (0) target = $region25
  $region24: #{tpu_custom_call.1} parent=0 // pred_region
    _
  $region25: #{tpu_custom_call.1} parent=0 // pred_fallthru
    _
  // Predicated region
  $region26: #{tpu_custom_call.1} parent=0 // pred_check
    _
  $region27: #{tpu_custom_call.1} parent=0 // pred_check_branch
    %26 = sbr.rel (0) target = $region29
  $region28: #{tpu_custom_call.1} parent=0 // pred_region
    _
  $region29: #{tpu_custom_call.1} parent=0 // pred_fallthru
    _
  %v27 = vld [vmem:[%s0] sm:$0xff]
  %v28 = vld [vmem:[%s1] sm:$0xff]
  %v29 = vld [vmem:[%s1 + $0x8] sm:$0xff]
  %v30 = vld [vmem:[%s1 + $0x10] sm:$0xff]
  %v31 = vld [vmem:[%s1 + $0x18] sm:$0xff]
  %v32 = vld [vmem:[%s2] sm:$0x1]
  %v34 = vperm.slane %v32, 0
  %vm36 = vcmask 261120
  %v38 = vsel %vm36, %v27, 0
  %40 = vmatpush.msra.mxu0 0.0
  %41 = vmatpush.msra.mxu0 0.0
  %42 = vmatpush.msra.mxu0 0.0
  %43 = vmatpush.msra.mxu0 0.0
  %44 = vmatpush.msra.mxu0 0.0
  %45 = vmatpush.msra.mxu0 0.0
  %46 = vmatpush.msra.mxu0 0.0
  %47 = vmatpush.msra.mxu0 0.0
  %48 = vmatpush.msra.mxu0 0.0
  %49 = vmatpush.msra.mxu0 0.0
  %50 = vmatpush.msra.mxu0 0.0
  %51 = vmatpush.msra.mxu0 0.0
  %52 = vmatpush.msra.mxu0 %v31
  %53 = vmatpush.msra.mxu0 %v30
  %54 = vmatpush.msra.mxu0 %v29
  %55 = vmatpush.msra.mxu0 %v28
  %56 = vmatmul.f32.gmra.mxu0 %v38
  %v57 = vpop.f32.mrf.mxu0
  %v58 = vadd.f32 %v34, %v57
  %59 = vdwg.mxu0
  %v60 = vxor.u32 %v58, 2147483648
  %v61 = vmul.f32 %v60, 1.442695
  %v62 = vpow.pop %v61
  %v63 = vadd.f32 %v62, 1.0
  %v64 = vrcp.pop %v63
  %v65 = vmul.f32 %v63, %v64
  %v66 = vsub.f32 1.0, %v65
  %v67 = vmul.f32 %v64, %v66
  %v68 = vadd.f32 %v64, %v67
  %vm69 = vweird.f32 %v63
  %vm70 = vweird.f32 %v64
  %vm71 = vmor %vm69, %vm70
  %v72 = vsel %vm71, %v64, %v68
  %v73 = vand.u32 2147483647, %v63
  %vm74 = vcmp.eq.f32.partialorder %v73, 8.507059e+37
  %v75 = vand.u32 %v63, 2147483648
  %v76 = vor.u32 1.1754944e-38, %v75
  %v77 = vsel %vm74, %v76, %v72
  %v78 = vmul.f32 1.0, %v77
  %v79 = vmul.f32 %v58, %v78
  %v80 = vld [vmem:[%s3] sm:$0xff]
  %v81 = vld [vmem:[%s3 + $0x8] sm:$0xff]
  %v82 = vld [vmem:[%s3 + $0x10] sm:$0xff]
  %v83 = vld [vmem:[%s3 + $0x18] sm:$0xff]
  %v84 = vld [vmem:[%s3 + $0x20] sm:$0xff]
  %v85 = vld [vmem:[%s3 + $0x28] sm:$0xff]
  %v86 = vld [vmem:[%s3 + $0x30] sm:$0xff]
  %v87 = vld [vmem:[%s3 + $0x38] sm:$0xff]
  %v88 = vld [vmem:[%s4] sm:$0x1]
  %v90 = vperm.slane %v88, 0
  %vm92 = vcmask 523264
  %v94 = vsel %vm92, %v79, 0
  %96 = vmatpush.msra.mxu0 0.0
  %97 = vmatpush.msra.mxu0 0.0
  %98 = vmatpush.msra.mxu0 0.0
  %99 = vmatpush.msra.mxu0 0.0
  %100 = vmatpush.msra.mxu0 0.0
  %101 = vmatpush.msra.mxu0 0.0
  %102 = vmatpush.msra.mxu0 0.0
  %103 = vmatpush.msra.mxu0 0.0
  %104 = vmatpush.msra.mxu0 %v87
  %105 = vmatpush.msra.mxu0 %v86
  %106 = vmatpush.msra.mxu0 %v85
  %107 = vmatpush.msra.mxu0 %v84
  %108 = vmatpush.msra.mxu0 %v83
  %109 = vmatpush.msra.mxu0 %v82
  %110 = vmatpush.msra.mxu0 %v81
  %111 = vmatpush.msra.mxu0 %v80
  %112 = vmatmul.f32.gmra.mxu0 %v94
  %v113 = vpop.f32.mrf.mxu0
  %v114 = vadd.f32 %v90, %v113
  %115 = vdwg.mxu0
  %v116 = vxor.u32 %v114, 2147483648
  %v117 = vmul.f32 %v116, 1.442695
  %v118 = vpow.pop %v117
  %v119 = vadd.f32 %v118, 1.0
  %v120 = vrcp.pop %v119
  %v121 = vmul.f32 %v119, %v120
  %v122 = vsub.f32 1.0, %v121
  %v123 = vmul.f32 %v120, %v122
  %v124 = vadd.f32 %v120, %v123
  %vm125 = vweird.f32 %v119
  %vm126 = vweird.f32 %v120
  %vm127 = vmor %vm125, %vm126
  %v128 = vsel %vm127, %v120, %v124
  %v129 = vand.u32 2147483647, %v119
  %vm130 = vcmp.eq.f32.partialorder %v129, 8.507059e+37
  %v131 = vand.u32 %v119, 2147483648
  %v132 = vor.u32 1.1754944e-38, %v131
  %v133 = vsel %vm130, %v132, %v128
  %v134 = vmul.f32 1.0, %v133
  %v135 = vmul.f32 %v114, %v134
  %v136 = vld [vmem:[%s5] sm:$0x1]
  %v138 = vperm.slane %v136, 0
  %v140 = vmul.f32 %v135, %v138
  %v141 = vsel %vm36, %v140, 0.0
  %142 = vadd.xlane.f32.xlu0 %v141
  %v143 = vpop.xlane.xlu0 %142
  %s144 = sld [smem:[#allocation2]]
  %v145 = vstv %s144
  %v146 = vadd.f32 %v143, %v145
  %vm147 = vcmask 7168
  %148 = vst.msk [vmem:[%s7] sm:$0xff] %vm147, %v146
  // Predicated region
  $region30: #{tpu_custom_call.1} parent=0 // pred_check
    _
  $region31: #{tpu_custom_call.1} parent=0 // pred_check_branch
    %150 = sbr.rel (0) target = $region33
  $region32: #{tpu_custom_call.1} parent=0 // pred_region
    _
  $region33: #{tpu_custom_call.1} parent=0 // pred_fallthru
    _
  // Predicated region
  $region34: #{tpu_custom_call.1} parent=0 // pred_check
    _
  $region35: #{tpu_custom_call.1} parent=0 // pred_check_branch
    %152 = sbr.rel (0) target = $region37
  $region36: #{tpu_custom_call.1} parent=0 // pred_region
    _
  $region37: #{tpu_custom_call.1} parent=0 // pred_fallthru
    _

</llo_original>
